<compile_context>
chip_gen: v5e
topology: v5e:2x2
jax: 0.10.0
libtpu: 0.0.40
codegen_flags: <defaults>
</compile_context>

<pallas_src>
import functools

import jax
import jax.numpy as jnp
from jax.experimental import pallas as pl
from jax.experimental.pallas import tpu as pltpu


def _round_up(x, m):
    return (x + m - 1) // m * m


def _prototype_ploss_kernel(feat_ref, proto_ref, lab_ref, out_ref, *,
                            temperature, num_classes, num_rows, tile_n):
    i = pl.program_id(0)

    f = feat_ref[...].astype(jnp.float32)          # (TN, C)
    p = proto_ref[...].astype(jnp.float32)         # (Mp, C), rows >= M are zero pad

    # --- F.normalize(feature, p=2, dim=1): x / max(||x||, 1e-12) ---
    # rsqrt(max(sumsq, 1e-24)) == 1 / max(sqrt(sumsq), 1e-12), runs on the EUP.
    sumsq = jnp.sum(f * f, axis=1, keepdims=True)
    f_n = f * jax.lax.rsqrt(jnp.maximum(sumsq, jnp.float32(1e-24)))

    # --- einsum('nc,mc->nm') on the MXU, f32 accumulation ---
    fp = jax.lax.dot_general(f_n, p, (((1,), (1,)), ((), ())),
                             preferred_element_type=jnp.float32)   # (TN, Mp)

    # --- log_softmax(fp / T) over the valid class columns only ---
    # (The l_neg columns of the original concat are all -inf and never
    #  selected, so they are dropped; padded class columns get -1e30.)
    s = fp * jnp.float32(1.0 / temperature)
    col = jax.lax.broadcasted_iota(jnp.int32, s.shape, 1)
    s = jnp.where(col < num_classes, s, jnp.float32(-1e30))

    m_row = jnp.max(s, axis=1, keepdims=True)                       # finite
    lse = jnp.log(jnp.sum(jnp.exp(s - m_row), axis=1, keepdims=True)) + m_row

    # --- nll_loss gather: pick column labels[i] via one-hot select ---
    lab = lab_ref[...]                                              # (TN, 1) int32
    picked = jnp.sum(jnp.where(col == lab, s, jnp.float32(0.0)),
                     axis=1, keepdims=True)                         # s[i, labels[i]]
    nll = lse - picked                                              # (TN, 1)

    # Zero out rows that are only batch padding (global row index >= N).
    row = jax.lax.broadcasted_iota(jnp.int32, nll.shape, 0) + i * tile_n
    out_ref[...] = jnp.where(row < num_rows, nll, jnp.float32(0.0))


def prototype_p_loss(feature, prototypes, labels, temperature, *, tile_n=256):
    n, c = feature.shape
    m = prototypes.shape[0]

    tn = min(tile_n, _round_up(n, 8))       # row tile (multiple of 8 sublanes)
    n_pad = _round_up(n, tn)
    m_pad = _round_up(m, 128)               # lane-dense class dimension
    num_tiles = n_pad // tn

    feature_p = feature if n_pad == n else jnp.pad(feature, ((0, n_pad - n), (0, 0)))
    protos_p = prototypes if m_pad == m else jnp.pad(prototypes, ((0, m_pad - m), (0, 0)))
    labels_col = jnp.pad(labels.astype(jnp.int32), (0, n_pad - n)).reshape(n_pad, 1)

    cost = pl.CostEstimate(
        flops=int(2 * n_pad * c * m_pad + 3 * n_pad * c + 6 * n_pad * m_pad),
        transcendentals=int(n_pad * (m_pad + 2)),
        bytes_accessed=int(feature_p.size * feature_p.dtype.itemsize
                           + num_tiles * protos_p.size * protos_p.dtype.itemsize
                           + labels_col.size * 4 + n_pad * 4),
    )

    per_row_nll = pl.pallas_call(
        functools.partial(_prototype_ploss_kernel,
                          temperature=float(temperature),
                          num_classes=m, num_rows=n, tile_n=tn),
        out_shape=jax.ShapeDtypeStruct((n_pad, 1), jnp.float32),
        grid_spec=pltpu.PrefetchScalarGridSpec(
            num_scalar_prefetch=0,
            grid=(num_tiles,),
            in_specs=[
                pl.BlockSpec((tn, c), lambda i: (i, 0)),      # feature row tile
                pl.BlockSpec((m_pad, c), lambda i: (0, 0)),   # prototypes (resident)
                pl.BlockSpec((tn, 1), lambda i: (i, 0)),      # labels column
            ],
            out_specs=pl.BlockSpec((tn, 1), lambda i: (i, 0)),
        ),
        compiler_params=pltpu.CompilerParams(
            dimension_semantics=("parallel",)),
        cost_estimate=cost,
    )(feature_p, protos_p, labels_col)

    # mean reduction of nll_loss over the real N rows (padded rows wrote 0).
    return jnp.sum(per_row_nll) / jnp.float32(n)


def _reference(feature, prototypes, labels, temperature):
    # Pure-JAX mirror of the literal PyTorch code (keeps the dead l_neg branch)
    # to verify the kernel's elimination is exact.
    f = feature.astype(jnp.float32)
    f = f / jnp.maximum(jnp.linalg.norm(f, axis=1, keepdims=True), 1e-12)
    fp = f @ prototypes.astype(jnp.float32).T
    pw = f @ f.T
    mask = (labels != labels).astype(jnp.float32)      # 1-D .T is a no-op
    l_neg = pw * mask[None, :]
    l_neg = jnp.where(l_neg < 1e-6, -jnp.inf, l_neg)
    logits = jnp.concatenate([fp, l_neg], axis=1) / temperature
    ls = jax.nn.log_softmax(logits, axis=1)
    return -jnp.mean(ls[jnp.arange(f.shape[0]), labels])


if __name__ == "__main__":
    key = jax.random.PRNGKey(0)
    N, C, M = 8, 32, 4          # batch, feature dim, num_classes
    temperature = 0.5

    k1, k2, k3 = jax.random.split(key, 3)
    feature = jax.random.normal(k1, (N, C), dtype=jnp.float32)
    # "prototypes" parameter: deterministic init, L2-normalized rows.
    prototypes = jax.random.normal(k2, (M, C), dtype=jnp.float32)
    prototypes = prototypes / jnp.linalg.norm(prototypes, axis=1, keepdims=True)
    labels = jax.random.randint(k3, (N,), 0, M, dtype=jnp.int32)

    loss = prototype_p_loss(feature, prototypes, labels, temperature)
    jax.block_until_ready(loss)

    ref = _reference(feature, prototypes, labels, temperature)
    assert jnp.isfinite(loss), f"non-finite loss: {loss}"
    assert jnp.allclose(loss, ref, rtol=1e-5, atol=1e-5), (loss, ref)
    print("KERNEL_OK")
</pallas_src>

<mosaic_0001>
module attributes {stable_mosaic.version = 11 : i64} {
  func.func @_prototype_ploss_kernel(%arg0: i32, %arg1: memref<8x32xf32, #tpu.memory_space<vmem>>, %arg2: memref<128x32xf32, #tpu.memory_space<vmem>>, %arg3: memref<8x1xi32, #tpu.memory_space<vmem>>, %arg4: memref<8x1xf32, #tpu.memory_space<vmem>>) attributes {dimension_semantics = [#tpu.dimension_semantics<parallel>], iteration_bounds = array<i64: 1>, scalar_prefetch = 0 : i64, scratch_operands = 0 : i64, tpu.core_type = #tpu.core_type<tc>, window_params = [{transform_indices = @transform_0, window_bounds = array<i64: 8, 32>}, {pipeline_mode = #tpu.pipeline_mode<synchronous>, transform_indices = @transform_1, window_bounds = array<i64: 128, 32>}, {transform_indices = @transform_2, window_bounds = array<i64: 8, 1>}, {transform_indices = @transform_3, window_bounds = array<i64: 8, 1>}]} {
    %c0 = arith.constant 0 : index
    %c0_0 = arith.constant 0 : index
    %0 = vector.load %arg1[%c0, %c0_0] : memref<8x32xf32, #tpu.memory_space<vmem>>, vector<8x32xf32>
    %c0_1 = arith.constant 0 : index
    %c0_2 = arith.constant 0 : index
    %1 = vector.load %arg2[%c0_1, %c0_2] : memref<128x32xf32, #tpu.memory_space<vmem>>, vector<128x32xf32>
    %2 = arith.mulf %0, %0 : vector<8x32xf32>
    %cst = arith.constant dense<0.000000e+00> : vector<8xf32>
    %3 = vector.multi_reduction <add>, %2, %cst [1] : vector<8x32xf32> to vector<8xf32>
    %4 = vector.shape_cast %3 : vector<8xf32> to vector<8x1xf32>
    %cst_3 = arith.constant 1.000000e-24 : f32
    %5 = vector.broadcast %cst_3 : f32 to vector<8x1xf32>
    %6 = arith.maximumf %4, %5 : vector<8x1xf32>
    %7 = math.rsqrt %6 : vector<8x1xf32>
    %8 = vector.broadcast %7 : vector<8x1xf32> to vector<8x32xf32>
    %9 = arith.mulf %0, %8 : vector<8x32xf32>
    %cst_4 = arith.constant dense<0.000000e+00> : vector<8x128xf32>
    %10 = tpu.matmul %9, %1, %cst_4 {dimension_numbers = #tpu.dot_dimension_numbers<[1], [1], [0], [0], [0, 0, 1, 0], [], []>} : vector<8x32xf32>, vector<128x32xf32>, vector<8x128xf32> -> vector<8x128xf32>
    %cst_5 = arith.constant 2.000000e+00 : f32
    %11 = vector.broadcast %cst_5 : f32 to vector<8x128xf32>
    %12 = arith.mulf %10, %11 : vector<8x128xf32>
    %13 = tpu.iota {dimensions = array<i32: 1>} : vector<8x128xi32>
    %c4_i32 = arith.constant 4 : i32
    %14 = vector.broadcast %c4_i32 : i32 to vector<8x128xi32>
    %15 = arith.cmpi slt, %13, %14 : vector<8x128xi32>
    %cst_6 = arith.constant -1.000000e+30 : f32
    %16 = vector.broadcast %cst_6 : f32 to vector<8x128xf32>
    %17 = arith.select %15, %12, %16 : vector<8x128xi1>, vector<8x128xf32>
    %cst_7 = arith.constant dense<0xFF800000> : vector<8xf32>
    %18 = vector.multi_reduction <maximumf>, %17, %cst_7 [1] : vector<8x128xf32> to vector<8xf32>
    %19 = vector.shape_cast %18 : vector<8xf32> to vector<8x1xf32>
    %20 = vector.broadcast %19 : vector<8x1xf32> to vector<8x128xf32>
    %21 = arith.subf %17, %20 : vector<8x128xf32>
    %22 = math.exp %21 : vector<8x128xf32>
    %cst_8 = arith.constant dense<0.000000e+00> : vector<8xf32>
    %23 = vector.multi_reduction <add>, %22, %cst_8 [1] : vector<8x128xf32> to vector<8xf32>
    %24 = vector.shape_cast %23 : vector<8xf32> to vector<8x1xf32>
    %25 = math.log %24 : vector<8x1xf32>
    %26 = arith.addf %25, %19 : vector<8x1xf32>
    %c0_9 = arith.constant 0 : index
    %c0_10 = arith.constant 0 : index
    %27 = vector.load %arg3[%c0_9, %c0_10] : memref<8x1xi32, #tpu.memory_space<vmem>>, vector<8x1xi32>
    %28 = vector.broadcast %27 : vector<8x1xi32> to vector<8x128xi32>
    %29 = arith.cmpi eq, %13, %28 : vector<8x128xi32>
    %cst_11 = arith.constant 0.000000e+00 : f32
    %30 = vector.broadcast %cst_11 : f32 to vector<8x128xf32>
    %31 = arith.select %29, %17, %30 : vector<8x128xi1>, vector<8x128xf32>
    %cst_12 = arith.constant dense<0.000000e+00> : vector<8xf32>
    %32 = vector.multi_reduction <add>, %31, %cst_12 [1] : vector<8x128xf32> to vector<8xf32>
    %33 = vector.shape_cast %32 : vector<8xf32> to vector<8x1xf32>
    %34 = arith.subf %26, %33 : vector<8x1xf32>
    %35 = tpu.iota {dimensions = array<i32: 0>} : vector<8x1xi32>
    %c8_i32 = arith.constant 8 : i32
    %36 = arith.muli %arg0, %c8_i32 : i32
    %37 = vector.broadcast %36 : i32 to vector<8x1xi32>
    %38 = arith.addi %35, %37 : vector<8x1xi32>
    %c8_i32_13 = arith.constant 8 : i32
    %39 = vector.broadcast %c8_i32_13 : i32 to vector<8x1xi32>
    %40 = arith.cmpi slt, %38, %39 : vector<8x1xi32>
    %cst_14 = arith.constant 0.000000e+00 : f32
    %41 = vector.broadcast %cst_14 : f32 to vector<8x1xf32>
    %42 = arith.select %40, %34, %41 : vector<8x1xi1>, vector<8x1xf32>
    %c0_15 = arith.constant 0 : index
    %c0_16 = arith.constant 0 : index
    %43 = vector.load %arg4[%c0_15, %c0_16] : memref<8x1xf32, #tpu.memory_space<vmem>>, vector<8x1xf32>
    tpu.vector_store %arg4[%c0_15, %c0_16], %42 {strides = array<i32>} : memref<8x1xf32, #tpu.memory_space<vmem>>, vector<8x1xf32>,
    return
  }
  func.func @transform_0(%arg0: i32) -> (i32, i32) {
    %c0_i32 = arith.constant 0 : i32
    %c0_i32_0 = arith.constant 0 : i32
    return %arg0, %c0_i32 : i32, i32
  }
  func.func @transform_1(%arg0: i32) -> (i32, i32) {
    %c0_i32 = arith.constant 0 : i32
    %c0_i32_0 = arith.constant 0 : i32
    %c0_i32_1 = arith.constant 0 : i32
    return %c0_i32, %c0_i32_0 : i32, i32
  }
  func.func @transform_2(%arg0: i32) -> (i32, i32) {
    %c0_i32 = arith.constant 0 : i32
    %c0_i32_0 = arith.constant 0 : i32
    return %arg0, %c0_i32 : i32, i32
  }
  func.func @transform_3(%arg0: i32) -> (i32, i32) {
    %c0_i32 = arith.constant 0 : i32
    %c0_i32_0 = arith.constant 0 : i32
    return %arg0, %c0_i32 : i32, i32
  }
}

</mosaic_0001>

<llo_original>
// kernel: tpu_custom_call.1
$region0: #{tpu_custom_call.1}
  #allocation0 [shape = 'u32[]', space=smem, size = 0x4, offset = 0x4, fixed_abs, tag = 'smem constant byte address 0x4 - core index']
  #allocation1 [shape = 'u32[72,128]{1,0:T(1,128)}', space=vmem, size = 0x9000, scoped, tag = 'internal scratch']
  %s0 = inlined_call_operand.vmem [shape: f32[8,32], index: 0, kind: input, shape index: {}]
  %s1 = inlined_call_operand.vmem [shape: f32[128,32], index: 1, kind: input, shape index: {}]
  %s2 = inlined_call_operand.vmem [shape: s32[8,1], index: 2, kind: input, shape index: {}]
  %s3 = inlined_call_operand.vmem [shape: f32[8,1], index: 3, kind: output, shape index: {}]
  %s4 = sld [smem:[#allocation0]]
  $region22: #{tpu_custom_call.1} parent=0
    _
  %s6 = ssub.s32 1, %s4
  %s7 = scalar_select 0, %s6, %s4
  // Predicated region
  $region2: #{tpu_custom_call.1} parent=0 // pred_check
    _
  $region3: #{tpu_custom_call.1} parent=0 // pred_check_branch
    %9 = sbr.rel (0) target = $region5
  $region4: #{tpu_custom_call.1} parent=0 // pred_region
    _
  $region5: #{tpu_custom_call.1} parent=0 // pred_fallthru
    _
  // Predicated region
  $region6: #{tpu_custom_call.1} parent=0 // pred_check
    _
  $region7: #{tpu_custom_call.1} parent=0 // pred_check_branch
    %11 = sbr.rel (0) target = $region9
  $region8: #{tpu_custom_call.1} parent=0 // pred_region
    _
  $region9: #{tpu_custom_call.1} parent=0 // pred_fallthru
    _
  // Predicated region
  $region10: #{tpu_custom_call.1} parent=0 // pred_check
    _
  $region11: #{tpu_custom_call.1} parent=0 // pred_check_branch
    %13 = sbr.rel (0) target = $region13
  $region12: #{tpu_custom_call.1} parent=0 // pred_region
    _
  $region13: #{tpu_custom_call.1} parent=0 // pred_fallthru
    _
  %v14 = vld [vmem:[%s0] sm:$0xff]
  %v15 = vld [vmem:[%s1] sm:$0xff]
  %v16 = vld [vmem:[%s1 + $0x8] sm:$0xff]
  %v17 = vld [vmem:[%s1 + $0x10] sm:$0xff]
  %v18 = vld [vmem:[%s1 + $0x18] sm:$0xff]
  %v19 = vld [vmem:[%s1 + $0x20] sm:$0xff]
  %v20 = vld [vmem:[%s1 + $0x28] sm:$0xff]
  %v21 = vld [vmem:[%s1 + $0x30] sm:$0xff]
  %v22 = vld [vmem:[%s1 + $0x38] sm:$0xff]
  %v23 = vld [vmem:[%s1 + $0x40] sm:$0xff]
  %v24 = vld [vmem:[%s1 + $0x48] sm:$0xff]
  %v25 = vld [vmem:[%s1 + $0x50] sm:$0xff]
  %v26 = vld [vmem:[%s1 + $0x58] sm:$0xff]
  %v27 = vld [vmem:[%s1 + $0x60] sm:$0xff]
  %v28 = vld [vmem:[%s1 + $0x68] sm:$0xff]
  %v29 = vld [vmem:[%s1 + $0x70] sm:$0xff]
  %v30 = vld [vmem:[%s1 + $0x78] sm:$0xff]
  %v31 = vmul.f32 %v14, %v14
  %vm32 = vcmask 261120
  %v33 = vsel %vm32, %v31, 0.0
  %34 = vadd.xlane.f32.xlu0 %v33
  %v35 = vpop.xlane.xlu0 %34
  %v36 = vmax.f32 %v35, 1e-24
  %v37 = vrsqrt.pop %v36
  %v38 = vmul.f32 %v37, %v36
  %v39 = vmul.f32 %v38, %v37
  %v40 = vmul.f32 0.5, %v39
  %v41 = vsub.f32 1.5, %v40
  %v42 = vmul.f32 %v37, %v41
  %vm43 = vweird.f32 %v36
  %vm44 = vweird.f32 %v37
  %vm45 = vmor %vm43, %vm44
  %v46 = vsel %vm45, %v37, %v42
  %v47 = vmul.f32 %v14, %v46
  %v49 = vsel %vm32, %v47, 0
  %v52 = vsel %vm32, %v15, 0
  %v55 = vsel %vm32, %v16, 0
  %v58 = vsel %vm32, %v17, 0
  %v61 = vsel %vm32, %v18, 0
  %v64 = vsel %vm32, %v19, 0
  %v67 = vsel %vm32, %v20, 0
  %v70 = vsel %vm32, %v21, 0
  %v73 = vsel %vm32, %v22, 0
  %v76 = vsel %vm32, %v23, 0
  %v79 = vsel %vm32, %v24, 0
  %v82 = vsel %vm32, %v25, 0
  %v85 = vsel %vm32, %v26, 0
  %v88 = vsel %vm32, %v27, 0
  %v91 = vsel %vm32, %v28, 0
  %v94 = vsel %vm32, %v29, 0
  %v97 = vsel %vm32, %v30, 0
  %99 = vmatpush.xpose.msra.mxu0 %v97
  %100 = vmatpush.xpose.msra.mxu0 %v94
  %101 = vmatpush.xpose.msra.mxu0 %v91
  %102 = vmatpush.xpose.msra.mxu0 %v88
  %103 = vmatpush.xpose.msra.mxu0 %v85
  %104 = vmatpush.xpose.msra.mxu0 %v82
  %105 = vmatpush.xpose.msra.mxu0 %v79
  %106 = vmatpush.xpose.msra.mxu0 %v76
  %107 = vmatpush.xpose.msra.mxu0 %v73
  %108 = vmatpush.xpose.msra.mxu0 %v70
  %109 = vmatpush.xpose.msra.mxu0 %v67
  %110 = vmatpush.xpose.msra.mxu0 %v64
  %111 = vmatpush.xpose.msra.mxu0 %v61
  %112 = vmatpush.xpose.msra.mxu0 %v58
  %113 = vmatpush.xpose.msra.mxu0 %v55
  %114 = vmatpush.xpose.msra.mxu0 %v52
  %115 = vmatmul.f32.gmra.mxu0 %v49
  %v116 = vpop.f32.mrf.mxu0
  %v117 = vadd.f32 0.0, %v116
  %118 = vdwg.mxu0
  %v119 = vmul.f32 %v117, 2.0
  %v120 = vlaneseq
  %v121 = vand.u32 %v120, 127
  %vm122 = vcmp.lt.s32.totalorder %v121, 4
  %v123 = vsel %vm122, %v119, -1e+30
  %124 = vmax.xlane.f32.xlu0 %v123
  %v125 = vpop.xlane.xlu0 %124
  %v126 = vsub.f32 %v123, %v125
  %v127 = vmul.f32 %v126, 1.442695
  %v128 = vpow.pop %v127
  %129 = vadd.xlane.f32.xlu0 %v128
  %v130 = vpop.xlane.xlu0 %129
  %v131 = vlog2.pop %v130
  %v132 = vmul.f32 %v131, 0.6931472
  %v133 = vadd.f32 %v132, %v125
  %v134 = vld [vmem:[%s2] sm:$0xff]
  %135 = vset.pattern.permute.xlu0 0
  %136 = vperm.xlu0 %135, %v134
  %v137 = vpop.permute.xlu0 %136
  %vm138 = vcmp.eq.s32.totalorder %v121, %v137
  %v139 = vsel %vm138, %v123, 0.0
  %140 = vadd.xlane.f32.xlu0 %v139
  %v141 = vpop.xlane.xlu0 %140
  %v142 = vsub.f32 %v133, %v141
  %v143 = vlaneseq
  %v144 = vshrl.u32 %v143, 7
  %s145 = smul.u32 0, 8
  %v146 = vstv %s145
  %v147 = vadd.s32 %v144, %v146
  %vm148 = vcmp.lt.s32.totalorder %v147, 8
  %v149 = vsel %vm148, %v142, 0.0
  %vm150 = vcmask 7168
  %151 = vst.msk [vmem:[%s3] sm:$0xff] %vm150, %v149
  // Predicated region
  $region14: #{tpu_custom_call.1} parent=0 // pred_check
    _
  $region15: #{tpu_custom_call.1} parent=0 // pred_check_branch
    %153 = sbr.rel (0) target = $region17
  $region16: #{tpu_custom_call.1} parent=0 // pred_region
    _
  $region17: #{tpu_custom_call.1} parent=0 // pred_fallthru
    _
  // Predicated region
  $region18: #{tpu_custom_call.1} parent=0 // pred_check
    _
  $region19: #{tpu_custom_call.1} parent=0 // pred_check_branch
    %155 = sbr.rel (0) target = $region21
  $region20: #{tpu_custom_call.1} parent=0 // pred_region
    _
  $region21: #{tpu_custom_call.1} parent=0 // pred_fallthru
    _

</llo_original>
